<compile_context>
chip_gen: v5e
topology: v5e:2x2
jax: 0.10.0
libtpu: 0.0.40
codegen_flags: <defaults>
</compile_context>

<pallas_src>
import jax
import jax.numpy as jnp
from jax.experimental import pallas as pl
from jax.experimental.pallas import tpu as pltpu

dropout = 0.2
n_embd = 120
hidden = 4 * n_embd  # 480

# "Hardware" sizes.
C_IN = n_embd   # 120 — x / w1 contraction dim kept at native width (full extent)
H_PAD = 512     # hidden 480 -> 512  (lane multiple)
C_PAD = 128     # output 120 -> 128  (lane-dense stores)
MAX_TM = 512    # max rows per grid step (multiple of 16 for bf16 packing)


def _round_up(x, m):
    return (x + m - 1) // m * m


def ffn_kernel(x_ref, w1_ref, b1_ref, w2_ref, b2_ref, o_ref):
    # x_ref:  (tm, 120)  f32   -> cast to bf16 on the VPU just before the MXU
    # w1_ref: (120, 512) bf16     b1_ref: (1, 512) f32
    # w2_ref: (512, 128) bf16     b2_ref: (1, 128) f32
    # o_ref:  (tm, 128)  bf16  (lane-dense store)
    x = x_ref[...].astype(jnp.bfloat16)
    h = jnp.dot(x, w1_ref[...], preferred_element_type=jnp.float32)
    h = jnp.maximum(h + b1_ref[...], 0.0)                       # bias + ReLU in f32
    y = jnp.dot(h.astype(jnp.bfloat16), w2_ref[...],
                preferred_element_type=jnp.float32)
    # Dropout in eval/inference mode == identity.
    o_ref[...] = (y + b2_ref[...]).astype(o_ref.dtype)


def prepare_params(w1, b1, w2, b2):
    """Zero-pad weights/biases to lane-aligned shapes and cast weights to bf16.
    Do this ONCE outside the per-token call so per-call weight DMA stays small."""
    w1p = jnp.pad(w1, ((0, 0), (0, H_PAD - w1.shape[1]))).astype(jnp.bfloat16)
    b1p = jnp.pad(b1, ((0, 0), (0, H_PAD - b1.shape[1]))).astype(jnp.float32)
    w2p = jnp.pad(w2, ((0, H_PAD - w2.shape[0]), (0, C_PAD - w2.shape[1]))).astype(jnp.bfloat16)
    b2p = jnp.pad(b2, ((0, 0), (0, C_PAD - b2.shape[1]))).astype(jnp.float32)
    return w1p, b1p, w2p, b2p


def _choose_tm(M):
    """Row tile: multiple of 16; for large M ensure >= 4 grid steps so both
    v7x TensorCores get work and double-buffering has something to prefetch."""
    if M <= MAX_TM:
        return max(16, _round_up(M, 16))
    return max(16, min(MAX_TM, _round_up((M + 3) // 4, 16)))


@jax.jit
def feed_forward(x, w1p, b1p, w2p, b2p):
    """x: (B, T, n_embd) float32 -> (B, T, n_embd) float32.
    w1p/b1p/w2p/b2p are the padded params from prepare_params()."""
    B, T, C = x.shape
    M = B * T
    tm = _choose_tm(M)
    Mp = _round_up(M, tm)

    x2d = x.reshape(M, C)                        # contiguous reshape, no copy
    if Mp != M:                                   # row-pad only when needed
        x2d = jnp.pad(x2d, ((0, Mp - M), (0, 0)))

    grid = (Mp // tm,)

    flops = 2 * Mp * (C_IN * H_PAD + H_PAD * C_PAD)
    bytes_accessed = (Mp * C_IN * 4                    # x (f32)
                      + C_IN * H_PAD * 2 + H_PAD * 4   # w1 + b1
                      + H_PAD * C_PAD * 2 + C_PAD * 4  # w2 + b2
                      + Mp * C_PAD * 2)                # out (bf16)

    out2d = pl.pallas_call(
        ffn_kernel,
        out_shape=jax.ShapeDtypeStruct((Mp, C_PAD), jnp.bfloat16),
        grid=grid,
        in_specs=[
            pl.BlockSpec((tm, C_IN), lambda i: (i, 0)),      # x tile (pipelined, f32)
            pl.BlockSpec((C_IN, H_PAD), lambda i: (0, 0)),   # w1 (VMEM-resident)
            pl.BlockSpec((1, H_PAD), lambda i: (0, 0)),      # b1
            pl.BlockSpec((H_PAD, C_PAD), lambda i: (0, 0)),  # w2
            pl.BlockSpec((1, C_PAD), lambda i: (0, 0)),      # b2
        ],
        out_specs=pl.BlockSpec((tm, C_PAD), lambda i: (i, 0)),  # lane-dense bf16 store
        compiler_params=pltpu.CompilerParams(
            dimension_semantics=("parallel",),
            vmem_limit_bytes=32 * 1024 * 1024,  # footprint ~2-3 MiB; safe on v5e/v6e/v7x
        ),
        cost_estimate=pl.CostEstimate(
            flops=flops, transcendentals=0, bytes_accessed=bytes_accessed),
    )(x2d, w1p, b1p, w2p, b2p)

    # Depad + upcast to honor the PyTorch module's f32 (B, T, n_embd) contract.
    return out2d[:M, :C].astype(x.dtype).reshape(B, T, C)


def init_params(key):
    """Deterministic init mimicking PyTorch nn.Linear default (uniform ±1/sqrt(fan_in))."""
    k1, k2, k3, k4 = jax.random.split(key, 4)
    bound1 = 1.0 / jnp.sqrt(jnp.float32(n_embd))
    bound2 = 1.0 / jnp.sqrt(jnp.float32(hidden))
    # Stored as (in, out) — pre-transposed relative to PyTorch's (out, in).
    w1 = jax.random.uniform(k1, (n_embd, hidden), jnp.float32, -bound1, bound1)
    b1 = jax.random.uniform(k2, (1, hidden), jnp.float32, -bound1, bound1)
    w2 = jax.random.uniform(k3, (hidden, n_embd), jnp.float32, -bound2, bound2)
    b2 = jax.random.uniform(k4, (1, n_embd), jnp.float32, -bound2, bound2)
    return w1, b1, w2, b2


if __name__ == "__main__":
    key = jax.random.PRNGKey(0)
    kx, kp = jax.random.split(key)

    B, T = 2, 8
    x = jax.random.normal(kx, (B, T, n_embd), jnp.float32)
    w1, b1, w2, b2 = init_params(kp)

    # Pad/cast once (weights stay reusable across calls).
    w1p, b1p, w2p, b2p = prepare_params(w1, b1, w2, b2)

    out = feed_forward(x, w1p, b1p, w2p, b2p)
    out = jax.block_until_ready(out)

    # Reference in plain JAX with the same bf16-input / f32-accumulate recipe,
    # including the kernel's bf16 output rounding (eval-mode dropout == identity).
    x2d = x.reshape(B * T, n_embd).astype(jnp.bfloat16)
    h_ref = jnp.dot(x2d, w1.astype(jnp.bfloat16),
                    preferred_element_type=jnp.float32) + b1
    h_ref = jnp.maximum(h_ref, 0.0)
    ref2d = jnp.dot(h_ref.astype(jnp.bfloat16), w2.astype(jnp.bfloat16),
                    preferred_element_type=jnp.float32) + b2
    ref = ref2d.astype(jnp.bfloat16).astype(jnp.float32).reshape(B, T, n_embd)

    assert out.shape == (B, T, n_embd)
    assert jnp.allclose(out, ref, atol=2e-2, rtol=2e-2), float(jnp.max(jnp.abs(out - ref)))

    print("KERNEL_OK")
</pallas_src>

<mosaic_0001>
module attributes {stable_mosaic.version = 11 : i64} {
  func.func @ffn_kernel(%arg0: i32, %arg1: memref<16x120xf32, #tpu.memory_space<vmem>>, %arg2: memref<120x512xbf16, #tpu.memory_space<vmem>>, %arg3: memref<1x512xf32, #tpu.memory_space<vmem>>, %arg4: memref<512x128xbf16, #tpu.memory_space<vmem>>, %arg5: memref<1x128xf32, #tpu.memory_space<vmem>>, %arg6: memref<16x128xbf16, #tpu.memory_space<vmem>>) attributes {dimension_semantics = [#tpu.dimension_semantics<parallel>], iteration_bounds = array<i64: 1>, scalar_prefetch = 0 : i64, scratch_operands = 0 : i64, tpu.core_type = #tpu.core_type<tc>, window_params = [{transform_indices = @transform_0, window_bounds = array<i64: 16, 120>}, {pipeline_mode = #tpu.pipeline_mode<synchronous>, transform_indices = @transform_1, window_bounds = array<i64: 120, 512>}, {pipeline_mode = #tpu.pipeline_mode<synchronous>, transform_indices = @transform_2, window_bounds = array<i64: 1, 512>}, {pipeline_mode = #tpu.pipeline_mode<synchronous>, transform_indices = @transform_3, window_bounds = array<i64: 512, 128>}, {pipeline_mode = #tpu.pipeline_mode<synchronous>, transform_indices = @transform_4, window_bounds = array<i64: 1, 128>}, {transform_indices = @transform_5, window_bounds = array<i64: 16, 128>}]} {
    %c0 = arith.constant 0 : index
    %c0_0 = arith.constant 0 : index
    %0 = vector.load %arg1[%c0, %c0_0] : memref<16x120xf32, #tpu.memory_space<vmem>>, vector<16x120xf32>
    %1 = arith.truncf %0 : vector<16x120xf32> to vector<16x120xbf16>
    %c0_1 = arith.constant 0 : index
    %c0_2 = arith.constant 0 : index
    %2 = vector.load %arg2[%c0_1, %c0_2] : memref<120x512xbf16, #tpu.memory_space<vmem>>, vector<120x512xbf16>
    %cst = arith.constant dense<0.000000e+00> : vector<16x512xf32>
    %3 = tpu.matmul %1, %2, %cst {dimension_numbers = #tpu.dot_dimension_numbers<[1], [0], [0], [1], [0, 0, 1, 1], [], []>} : vector<16x120xbf16>, vector<120x512xbf16>, vector<16x512xf32> -> vector<16x512xf32>
    %c0_3 = arith.constant 0 : index
    %c0_4 = arith.constant 0 : index
    %4 = vector.load %arg3[%c0_3, %c0_4] : memref<1x512xf32, #tpu.memory_space<vmem>>, vector<1x512xf32>
    %5 = vector.broadcast %4 : vector<1x512xf32> to vector<16x512xf32>
    %6 = arith.addf %3, %5 : vector<16x512xf32>
    %cst_5 = arith.constant 0.000000e+00 : f32
    %7 = vector.broadcast %cst_5 : f32 to vector<16x512xf32>
    %8 = arith.maximumf %6, %7 : vector<16x512xf32>
    %9 = arith.truncf %8 : vector<16x512xf32> to vector<16x512xbf16>
    %c0_6 = arith.constant 0 : index
    %c0_7 = arith.constant 0 : index
    %10 = vector.load %arg4[%c0_6, %c0_7] : memref<512x128xbf16, #tpu.memory_space<vmem>>, vector<512x128xbf16>
    %cst_8 = arith.constant dense<0.000000e+00> : vector<16x128xf32>
    %11 = tpu.matmul %9, %10, %cst_8 {dimension_numbers = #tpu.dot_dimension_numbers<[1], [0], [0], [1], [0, 0, 1, 1], [], []>} : vector<16x512xbf16>, vector<512x128xbf16>, vector<16x128xf32> -> vector<16x128xf32>
    %c0_9 = arith.constant 0 : index
    %c0_10 = arith.constant 0 : index
    %12 = vector.load %arg5[%c0_9, %c0_10] : memref<1x128xf32, #tpu.memory_space<vmem>>, vector<1x128xf32>
    %13 = vector.broadcast %12 : vector<1x128xf32> to vector<16x128xf32>
    %14 = arith.addf %11, %13 : vector<16x128xf32>
    %15 = arith.truncf %14 : vector<16x128xf32> to vector<16x128xbf16>
    %c0_11 = arith.constant 0 : index
    %c0_12 = arith.constant 0 : index
    %16 = vector.load %arg6[%c0_11, %c0_12] : memref<16x128xbf16, #tpu.memory_space<vmem>>, vector<16x128xbf16>
    tpu.vector_store %arg6[%c0_11, %c0_12], %15 {strides = array<i32>} : memref<16x128xbf16, #tpu.memory_space<vmem>>, vector<16x128xbf16>,
    return
  }
  func.func @transform_0(%arg0: i32) -> (i32, i32) {
    %c0_i32 = arith.constant 0 : i32
    %c0_i32_0 = arith.constant 0 : i32
    return %arg0, %c0_i32 : i32, i32
  }
  func.func @transform_1(%arg0: i32) -> (i32, i32) {
    %c0_i32 = arith.constant 0 : i32
    %c0_i32_0 = arith.constant 0 : i32
    %c0_i32_1 = arith.constant 0 : i32
    return %c0_i32, %c0_i32_0 : i32, i32
  }
  func.func @transform_2(%arg0: i32) -> (i32, i32) {
    %c0_i32 = arith.constant 0 : i32
    %c0_i32_0 = arith.constant 0 : i32
    %c0_i32_1 = arith.constant 0 : i32
    return %c0_i32, %c0_i32_0 : i32, i32
  }
  func.func @transform_3(%arg0: i32) -> (i32, i32) {
    %c0_i32 = arith.constant 0 : i32
    %c0_i32_0 = arith.constant 0 : i32
    %c0_i32_1 = arith.constant 0 : i32
    return %c0_i32, %c0_i32_0 : i32, i32
  }
  func.func @transform_4(%arg0: i32) -> (i32, i32) {
    %c0_i32 = arith.constant 0 : i32
    %c0_i32_0 = arith.constant 0 : i32
    %c0_i32_1 = arith.constant 0 : i32
    return %c0_i32, %c0_i32_0 : i32, i32
  }
  func.func @transform_5(%arg0: i32) -> (i32, i32) {
    %c0_i32 = arith.constant 0 : i32
    %c0_i32_0 = arith.constant 0 : i32
    return %arg0, %c0_i32 : i32, i32
  }
}

</mosaic_0001>

<llo_original>
// kernel: feed_forward.1
$region0: #{feed_forward.1}
  #allocation0 [shape = 'u32[]', space=smem, size = 0x4, offset = 0x4, fixed_abs, tag = 'smem constant byte address 0x4 - core index']
  #allocation1 [shape = 'u32[72,128]{1,0:T(1,128)}', space=vmem, size = 0x9000, scoped, tag = 'internal scratch']
  %s0 = inlined_call_operand.hbm [shape: f32[16,120], index: 0, kind: input, shape index: {}]
  %s1 = inlined_call_operand.hbm [shape: bf16[120,512], index: 1, kind: input, shape index: {}]
  %s2 = inlined_call_operand.hbm [shape: f32[1,512], index: 2, kind: input, shape index: {}]
  %s3 = inlined_call_operand.hbm [shape: bf16[512,128], index: 3, kind: input, shape index: {}]
  %s4 = inlined_call_operand.vmem [shape: f32[1,128], index: 4, kind: input, shape index: {}]
  %s5 = inlined_call_operand.vmem [shape: bf16[16,128], index: 5, kind: output, shape index: {}]
  %s6 = sld [smem:[#allocation0]]
  $region46: #{feed_forward.1} parent=0
    _
  %s8 = ssub.s32 1, %s6
  %s9 = scalar_select 0, %s8, %s6
  $region1: #{feed_forward.1} parent=0
    #allocation2 [shape = 'u8[8192]{0}', space=vmem, size = 0x2000, scoped, tag = 'input window, operand 0, single buffered']
    #allocation3 [shape = 's32[1]{0}', space=sflag, size = 0x4, scoped, tag = 'scoped memory for feed_forward.1']
    #allocation4 [shape = 'u8[122880]{0}', space=vmem, size = 0x1e000, scoped, tag = 'input window, operand 1, single buffered']
    #allocation5 [shape = 's32[1]{0}', space=sflag, size = 0x4, scoped, tag = 'scoped memory for feed_forward.1']
    #allocation6 [shape = 'u8[2048]{0}', space=vmem, size = 0x800, scoped, tag = 'input window, operand 2, single buffered']
    #allocation7 [shape = 'u8[131072]{0}', space=vmem, size = 0x20000, scoped, tag = 'input window, operand 3, single buffered']
    #allocation8 [shape = 's32[1]{0}', space=sflag, size = 0x4, scoped, tag = 'scoped memory for feed_forward.1']
    %10 = vsyncpa [#allocation3], 0
    %11 = vsyncpa [#allocation5], 0
    %12 = vsyncpa [#allocation8], 0
    // Predicated region
    $region2: #{feed_forward.1} parent=1 // pred_check
      _
    $region3: #{feed_forward.1} parent=1 // pred_check_branch
      %14 = sbr.rel (0) target = $region5
    $region4: #{feed_forward.1} parent=1 // pred_region
      %16 = vsyncadd [#allocation3], 0
      %s17 = sshll.u32 %s0, 4
      %s18 = int_to_ptr.hbm [resolvable:$true] %s17
      %s19 = sshll.u32 [#allocation2], 4
      %s20 = int_to_ptr.vmem [resolvable:$true] %s19
      %25 = dma.hbm_to_vmem [thread:$0]  %s18, 256, %s20, [#allocation3], 128, 128, 8
    $region5: #{feed_forward.1} parent=1 // pred_fallthru
      _
    // Predicated region
    $region6: #{feed_forward.1} parent=1 // pred_check
      _
    $region7: #{feed_forward.1} parent=1 // pred_check_branch
      %27 = sbr.rel (0) target = $region9
    $region8: #{feed_forward.1} parent=1 // pred_region
      %29 = vsyncadd [#allocation5], 0
      %s30 = sshll.u32 %s1, 4
      %s31 = int_to_ptr.hbm [resolvable:$true] %s30
      %s32 = sshll.u32 [#allocation4], 4
      %s33 = int_to_ptr.vmem [resolvable:$true] %s32
      %38 = dma.hbm_to_vmem [thread:$0]  %s31, 3840, %s33, [#allocation5], 256, 256, 16
    $region9: #{feed_forward.1} parent=1 // pred_fallthru
      _
    // Predicated region
    $region10: #{feed_forward.1} parent=1 // pred_check
      _
    $region11: #{feed_forward.1} parent=1 // pred_check_branch
      %40 = sbr.rel (0) target = $region13
    $region12: #{feed_forward.1} parent=1 // pred_region
      %42 = vsyncadd [#allocation5], 0
      %s44 = sshll.u32 %s2, 4
      %s45 = int_to_ptr.hbm [resolvable:$true] %s44
      %s46 = sshll.u32 [#allocation6], 4
      %s47 = int_to_ptr.vmem [resolvable:$true] %s46
      %49 = dma.hbm_to_vmem [thread:$0]  %s45, 64, %s47, [#allocation5]
    $region13: #{feed_forward.1} parent=1 // pred_fallthru
      _
    // Predicated region
    $region14: #{feed_forward.1} parent=1 // pred_check
      _
    $region15: #{feed_forward.1} parent=1 // pred_check_branch
      %51 = sbr.rel (0) target = $region17
    $region16: #{feed_forward.1} parent=1 // pred_region
      %53 = vsyncadd [#allocation8], 0
      %s54 = sshll.u32 %s3, 4
      %s55 = int_to_ptr.hbm [resolvable:$true] %s54
      %s56 = sshll.u32 [#allocation7], 4
      %s57 = int_to_ptr.vmem [resolvable:$true] %s56
      %62 = dma.hbm_to_vmem [thread:$0]  %s55, 4096, %s57, [#allocation8], 64, 64, 4
    $region17: #{feed_forward.1} parent=1 // pred_fallthru
      _
    // Predicated region
    $region18: #{feed_forward.1} parent=1 // pred_check
      _
    $region19: #{feed_forward.1} parent=1 // pred_check_branch
      %64 = sbr.rel (0) target = $region21
    $region20: #{feed_forward.1} parent=1 // pred_region
      _
    $region21: #{feed_forward.1} parent=1 // pred_fallthru
      _
    // Predicated region
    $region22: #{feed_forward.1} parent=1 // pred_check
      _
    $region23: #{feed_forward.1} parent=1 // pred_check_branch
      %66 = sbr.rel (0) target = $region25
    $region24: #{feed_forward.1} parent=1 // pred_region
      %68 = dma.done [#allocation3], 256
    $region25: #{feed_forward.1} parent=1 // pred_fallthru
      _
    // Predicated region
    $region26: #{feed_forward.1} parent=1 // pred_check
      _
    $region27: #{feed_forward.1} parent=1 // pred_check_branch
      %70 = sbr.rel (0) target = $region29
    $region28: #{feed_forward.1} parent=1 // pred_region
      %72 = dma.done [#allocation5], 3840
    $region29: #{feed_forward.1} parent=1 // pred_fallthru
      _
    // Predicated region
    $region30: #{feed_forward.1} parent=1 // pred_check
      _
    $region31: #{feed_forward.1} parent=1 // pred_check_branch
      %74 = sbr.rel (0) target = $region33
    $region32: #{feed_forward.1} parent=1 // pred_region
      %76 = dma.done [#allocation5], 64
    $region33: #{feed_forward.1} parent=1 // pred_fallthru
      _
    // Predicated region
    $region34: #{feed_forward.1} parent=1 // pred_check
      _
    $region35: #{feed_forward.1} parent=1 // pred_check_branch
      %78 = sbr.rel (0) target = $region37
    $region36: #{feed_forward.1} parent=1 // pred_region
      %80 = dma.done [#allocation8], 4096
    $region37: #{feed_forward.1} parent=1 // pred_fallthru
      _
    %v81 = vld [vmem:[#allocation2] sm:$0xff]
    %v82 = vld [vmem:[#allocation2 + $0x8] sm:$0xff]
    %v83 = vpack.c.bf16 %v82, %v81
    %v84 = vld [vmem:[#allocation4] sm:$0xff]
    %v85 = vld [vmem:[#allocation4 + $0x8] sm:$0xff]
    %v86 = vld [vmem:[#allocation4 + $0x10] sm:$0xff]
    %v87 = vld [vmem:[#allocation4 + $0x18] sm:$0xff]
    %v88 = vld [vmem:[#allocation4 + $0x20] sm:$0xff]
    %v89 = vld [vmem:[#allocation4 + $0x28] sm:$0xff]
    %v90 = vld [vmem:[#allocation4 + $0x30] sm:$0xff]
    %v91 = vld [vmem:[#allocation4 + $0x38] sm:$0xff]
    %v92 = vld [vmem:[#allocation4 + $0x40] sm:$0xff]
    %v93 = vld [vmem:[#allocation4 + $0x48] sm:$0xff]
    %v94 = vld [vmem:[#allocation4 + $0x50] sm:$0xff]
    %v95 = vld [vmem:[#allocation4 + $0x58] sm:$0xff]
    %v96 = vld [vmem:[#allocation4 + $0x60] sm:$0xff]
    %v97 = vld [vmem:[#allocation4 + $0x68] sm:$0xff]
    %v98 = vld [vmem:[#allocation4 + $0x70] sm:$0xff]
    %v99 = vld [vmem:[#allocation4 + $0x78] sm:$0xff]
    %v100 = vld [vmem:[#allocation4 + $0x80] sm:$0xff]
    %v101 = vld [vmem:[#allocation4 + $0x88] sm:$0xff]
    %v102 = vld [vmem:[#allocation4 + $0x90] sm:$0xff]
    %v103 = vld [vmem:[#allocation4 + $0x98] sm:$0xff]
    %v104 = vld [vmem:[#allocation4 + $0xa0] sm:$0xff]
    %v105 = vld [vmem:[#allocation4 + $0xa8] sm:$0xff]
    %v106 = vld [vmem:[#allocation4 + $0xb0] sm:$0xff]
    %v107 = vld [vmem:[#allocation4 + $0xb8] sm:$0xff]
    %v108 = vld [vmem:[#allocation4 + $0xc0] sm:$0xff]
    %v109 = vld [vmem:[#allocation4 + $0xc8] sm:$0xff]
    %v110 = vld [vmem:[#allocation4 + $0xd0] sm:$0xff]
    %v111 = vld [vmem:[#allocation4 + $0xd8] sm:$0xff]
    %v112 = vld [vmem:[#allocation4 + $0xe0] sm:$0xff]
    %v113 = vld [vmem:[#allocation4 + $0xe8] sm:$0xff]
    %v114 = vld [vmem:[#allocation6] sm:$0xf]
    %v116 = vperm.slane %v114, 0
    %v117 = vperm.slane %v114, 1
    %v118 = vperm.slane %v114, 2
    %v119 = vperm.slane %v114, 3
    %v154 = vunpack.c.l.b16 %v84
    %v155 = vunpack.c.h.b16 %v84
    %v156 = vunpack.c.l.b16 %v85
    %v157 = vunpack.c.h.b16 %v85
    %v158 = vunpack.c.l.b16 %v86
    %v159 = vunpack.c.h.b16 %v86
    %v160 = vunpack.c.l.b16 %v87
    %v161 = vunpack.c.h.b16 %v87
    %v162 = vunpack.c.l.b16 %v88
    %v163 = vunpack.c.h.b16 %v88
    %v164 = vunpack.c.l.b16 %v89
    %v165 = vunpack.c.h.b16 %v89
    %v166 = vunpack.c.l.b16 %v90
    %v167 = vunpack.c.h.b16 %v90
    %v168 = vunpack.c.l.b16 %v91
    %v169 = vunpack.c.h.b16 %v91
    %v170 = vunpack.c.l.b16 %v92
    %v171 = vunpack.c.h.b16 %v92
    %v172 = vunpack.c.l.b16 %v93
    %v173 = vunpack.c.h.b16 %v93
    %v174 = vunpack.c.l.b16 %v94
    %v175 = vunpack.c.h.b16 %v94
    %v176 = vunpack.c.l.b16 %v95
    %v177 = vunpack.c.h.b16 %v95
    %v178 = vunpack.c.l.b16 %v96
    %v179 = vunpack.c.h.b16 %v96
    %v180 = vunpack.c.l.b16 %v97
    %v181 = vunpack.c.h.b16 %v97
    %v182 = vunpack.c.l.b16 %v98
    %v183 = vunpack.c.h.b16 %v98
    %v184 = vunpack.c.l.b16 %v99
    %v185 = vunpack.c.h.b16 %v99
    %v186 = vunpack.c.l.b16 %v100
    %v187 = vunpack.c.h.b16 %v100
    %v188 = vunpack.c.l.b16 %v101
    %v189 = vunpack.c.h.b16 %v101
    %v190 = vunpack.c.l.b16 %v102
    %v191 = vunpack.c.h.b16 %v102
    %v192 = vunpack.c.l.b16 %v103
    %v193 = vunpack.c.h.b16 %v103
    %v194 = vunpack.c.l.b16 %v104
    %v195 = vunpack.c.h.b16 %v104
    %v196 = vunpack.c.l.b16 %v105
    %v197 = vunpack.c.h.b16 %v105
    %v198 = vunpack.c.l.b16 %v106
    %v199 = vunpack.c.h.b16 %v106
    %v200 = vunpack.c.l.b16 %v107
    %v201 = vunpack.c.h.b16 %v107
    %v202 = vunpack.c.l.b16 %v108
    %v203 = vunpack.c.h.b16 %v108
    %v204 = vunpack.c.l.b16 %v109
    %v205 = vunpack.c.h.b16 %v109
    %v206 = vunpack.c.l.b16 %v110
    %v207 = vunpack.c.h.b16 %v110
    %v208 = vunpack.c.l.b16 %v111
    %v209 = vunpack.c.h.b16 %v111
    %v210 = vunpack.c.l.b16 %v112
    %v211 = vunpack.c.h.b16 %v112
    %v212 = vunpack.c.l.b16 %v113
    %v213 = vunpack.c.h.b16 %v113
    %v214 = vpack.c.b16 %v158, %v154
    %v215 = vpack.c.b16 %v159, %v155
    %v216 = vpack.c.b16 %v160, %v156
    %v217 = vpack.c.b16 %v161, %v157
    %v218 = vpack.c.b16 %v166, %v162
    %v219 = vpack.c.b16 %v167, %v163
    %v220 = vpack.c.b16 %v168, %v164
    %v221 = vpack.c.b16 %v169, %v165
    %v222 = vpack.c.b16 %v174, %v170
    %v223 = vpack.c.b16 %v175, %v171
    %v224 = vpack.c.b16 %v176, %v172
    %v225 = vpack.c.b16 %v177, %v173
    %v226 = vpack.c.b16 %v182, %v178
    %v227 = vpack.c.b16 %v183, %v179
    %v228 = vpack.c.b16 %v184, %v180
    %v229 = vpack.c.b16 %v185, %v181
    %v230 = vpack.c.b16 %v190, %v186
    %v231 = vpack.c.b16 %v191, %v187
    %v232 = vpack.c.b16 %v192, %v188
    %v233 = vpack.c.b16 %v193, %v189
    %v234 = vpack.c.b16 %v198, %v194
    %v235 = vpack.c.b16 %v199, %v195
    %v236 = vpack.c.b16 %v200, %v196
    %v237 = vpack.c.b16 %v201, %v197
    %v238 = vpack.c.b16 %v206, %v202
    %v239 = vpack.c.b16 %v207, %v203
    %v240 = vpack.c.b16 %v208, %v204
    %v241 = vpack.c.b16 %v209, %v205
    %v242 = vpack.c.b16 %v210, %v210
    %v243 = vpack.c.b16 %v211, %v211
    %v244 = vpack.c.b16 %v212, %v212
    %v245 = vpack.c.b16 %v213, %v213
    %vm274 = vcmask 982016
    %v276 = vsel %vm274, %v83, 0
    %vm278 = vcmask 1043456
    %v280 = vsel %vm278, %v242, 0
    %v283 = vsel %vm278, %v243, 0
    %v286 = vsel %vm278, %v244, 0
    %v289 = vsel %vm278, %v245, 0
    %291 = vmatpush.bf16.msra.mxu0 %v280
    %292 = vmatpush.bf16.msra.mxu0 %v238
    %293 = vmatpush.bf16.msra.mxu0 %v234
    %294 = vmatpush.bf16.msra.mxu0 %v230
    %295 = vmatpush.bf16.msra.mxu0 %v226
    %296 = vmatpush.bf16.msra.mxu0 %v222
    %297 = vmatpush.bf16.msra.mxu0 %v218
    %298 = vmatpush.bf16.msra.mxu0 %v214
    %299 = vmatmul.bf16.gmra.mxu0 %v276
    %v300 = vpop.f32.mrf.mxu0
    %v301 = vadd.f32 %v116, %v300
    %v302 = vpop.f32.mrf.mxu0
    %v303 = vadd.f32 %v116, %v302
    %304 = vdwg.mxu0
    %305 = vmatpush.bf16.msra.mxu0 %v283
    %306 = vmatpush.bf16.msra.mxu0 %v239
    %307 = vmatpush.bf16.msra.mxu0 %v235
    %308 = vmatpush.bf16.msra.mxu0 %v231
    %309 = vmatpush.bf16.msra.mxu0 %v227
    %310 = vmatpush.bf16.msra.mxu0 %v223
    %311 = vmatpush.bf16.msra.mxu0 %v219
    %312 = vmatpush.bf16.msra.mxu0 %v215
    %313 = vmatmul.bf16.gmra.mxu0 %v276
    %v314 = vpop.f32.mrf.mxu0
    %v315 = vadd.f32 %v117, %v314
    %v316 = vpop.f32.mrf.mxu0
    %v317 = vadd.f32 %v117, %v316
    %318 = vdwg.mxu0
    %319 = vmatpush.bf16.msra.mxu0 %v286
    %320 = vmatpush.bf16.msra.mxu0 %v240
    %321 = vmatpush.bf16.msra.mxu0 %v236
    %322 = vmatpush.bf16.msra.mxu0 %v232
    %323 = vmatpush.bf16.msra.mxu0 %v228
    %324 = vmatpush.bf16.msra.mxu0 %v224
    %325 = vmatpush.bf16.msra.mxu0 %v220
    %326 = vmatpush.bf16.msra.mxu0 %v216
    %327 = vmatmul.bf16.gmra.mxu0 %v276
    %v328 = vpop.f32.mrf.mxu0
    %v329 = vadd.f32 %v118, %v328
    %v330 = vpop.f32.mrf.mxu0
    %v331 = vadd.f32 %v118, %v330
    %332 = vdwg.mxu0
    %333 = vmatpush.bf16.msra.mxu0 %v289
    %334 = vmatpush.bf16.msra.mxu0 %v241
    %335 = vmatpush.bf16.msra.mxu0 %v237
    %336 = vmatpush.bf16.msra.mxu0 %v233
    %337 = vmatpush.bf16.msra.mxu0 %v229
    %338 = vmatpush.bf16.msra.mxu0 %v225
    %339 = vmatpush.bf16.msra.mxu0 %v221
    %340 = vmatpush.bf16.msra.mxu0 %v217
    %341 = vmatmul.bf16.gmra.mxu0 %v276
    %v342 = vpop.f32.mrf.mxu0
    %v343 = vadd.f32 %v119, %v342
    %v344 = vpop.f32.mrf.mxu0
    %v345 = vadd.f32 %v119, %v344
    %346 = vdwg.mxu0
    %v347 = vmax.f32 %v301, 0.0
    %v348 = vmax.f32 %v315, 0.0
    %v349 = vmax.f32 %v329, 0.0
    %v350 = vmax.f32 %v343, 0.0
    %v351 = vmax.f32 %v303, 0.0
    %v352 = vmax.f32 %v317, 0.0
    %v353 = vmax.f32 %v331, 0.0
    %v354 = vmax.f32 %v345, 0.0
    %v355 = vpack.c.bf16 %v351, %v347
    %v356 = vpack.c.bf16 %v352, %v348
    %v357 = vpack.c.bf16 %v353, %v349
    %v358 = vpack.c.bf16 %v354, %v350
    %v359 = vld [vmem:[#allocation7] sm:$0xf]
    %v360 = vld [vmem:[#allocation7 + $0x4] sm:$0xf]
    %v361 = vld [vmem:[#allocation7 + $0x8] sm:$0xf]
    %v362 = vld [vmem:[#allocation7 + $0xc] sm:$0xf]
    %v363 = vld [vmem:[#allocation7 + $0x10] sm:$0xf]
    %v364 = vld [vmem:[#allocation7 + $0x14] sm:$0xf]
    %v365 = vld [vmem:[#allocation7 + $0x18] sm:$0xf]
    %v366 = vld [vmem:[#allocation7 + $0x1c] sm:$0xf]
    %v367 = vld [vmem:[#allocation7 + $0x20] sm:$0xf]
    %v368 = vld [vmem:[#allocation7 + $0x24] sm:$0xf]
    %v369 = vld [vmem:[#allocation7 + $0x28] sm:$0xf]
    %v370 = vld [vmem:[#allocation7 + $0x2c] sm:$0xf]
    %v371 = vld [vmem:[#allocation7 + $0x30] sm:$0xf]
    %v372 = vld [vmem:[#allocation7 + $0x34] sm:$0xf]
    %v373 = vld [vmem:[#allocation7 + $0x38] sm:$0xf]
    %v374 = vld [vmem:[#allocation7 + $0x3c] sm:$0xf]
    %v375 = vld [vmem:[#allocation7 + $0x40] sm:$0xf]
    %v376 = vld [vmem:[#allocation7 + $0x44] sm:$0xf]
    %v377 = vld [vmem:[#allocation7 + $0x48] sm:$0xf]
    %v378 = vld [vmem:[#allocation7 + $0x4c] sm:$0xf]
    %v379 = vld [vmem:[#allocation7 + $0x50] sm:$0xf]
    %v380 = vld [vmem:[#allocation7 + $0x54] sm:$0xf]
    %v381 = vld [vmem:[#allocation7 + $0x58] sm:$0xf]
    %v382 = vld [vmem:[#allocation7 + $0x5c] sm:$0xf]
    %v383 = vld [vmem:[#allocation7 + $0x60] sm:$0xf]
    %v384 = vld [vmem:[#allocation7 + $0x64] sm:$0xf]
    %v385 = vld [vmem:[#allocation7 + $0x68] sm:$0xf]
    %v386 = vld [vmem:[#allocation7 + $0x6c] sm:$0xf]
    %v387 = vld [vmem:[#allocation7 + $0x70] sm:$0xf]
    %v388 = vld [vmem:[#allocation7 + $0x74] sm:$0xf]
    %v389 = vld [vmem:[#allocation7 + $0x78] sm:$0xf]
    %v390 = vld [vmem:[#allocation7 + $0x7c] sm:$0xf]
    %v391 = vld [vmem:[#allocation7 + $0x80] sm:$0xf]
    %v392 = vld [vmem:[#allocation7 + $0x84] sm:$0xf]
    %v393 = vld [vmem:[#allocation7 + $0x88] sm:$0xf]
    %v394 = vld [vmem:[#allocation7 + $0x8c] sm:$0xf]
    %v395 = vld [vmem:[#allocation7 + $0x90] sm:$0xf]
    %v396 = vld [vmem:[#allocation7 + $0x94] sm:$0xf]
    %v397 = vld [vmem:[#allocation7 + $0x98] sm:$0xf]
    %v398 = vld [vmem:[#allocation7 + $0x9c] sm:$0xf]
    %v399 = vld [vmem:[#allocation7 + $0xa0] sm:$0xf]
    %v400 = vld [vmem:[#allocation7 + $0xa4] sm:$0xf]
    %v401 = vld [vmem:[#allocation7 + $0xa8] sm:$0xf]
    %v402 = vld [vmem:[#allocation7 + $0xac] sm:$0xf]
    %v403 = vld [vmem:[#allocation7 + $0xb0] sm:$0xf]
    %v404 = vld [vmem:[#allocation7 + $0xb4] sm:$0xf]
    %v405 = vld [vmem:[#allocation7 + $0xb8] sm:$0xf]
    %v406 = vld [vmem:[#allocation7 + $0xbc] sm:$0xf]
    %v407 = vld [vmem:[#allocation7 + $0xc0] sm:$0xf]
    %v408 = vld [vmem:[#allocation7 + $0xc4] sm:$0xf]
    %v409 = vld [vmem:[#allocation7 + $0xc8] sm:$0xf]
    %v410 = vld [vmem:[#allocation7 + $0xcc] sm:$0xf]
    %v411 = vld [vmem:[#allocation7 + $0xd0] sm:$0xf]
    %v412 = vld [vmem:[#allocation7 + $0xd4] sm:$0xf]
    %v413 = vld [vmem:[#allocation7 + $0xd8] sm:$0xf]
    %v414 = vld [vmem:[#allocation7 + $0xdc] sm:$0xf]
    %v415 = vld [vmem:[#allocation7 + $0xe0] sm:$0xf]
    %v416 = vld [vmem:[#allocation7 + $0xe4] sm:$0xf]
    %v417 = vld [vmem:[#allocation7 + $0xe8] sm:$0xf]
    %v418 = vld [vmem:[#allocation7 + $0xec] sm:$0xf]
    %v419 = vld [vmem:[#allocation7 + $0xf0] sm:$0xf]
    %v420 = vld [vmem:[#allocation7 + $0xf4] sm:$0xf]
    %v421 = vld [vmem:[#allocation7 + $0xf8] sm:$0xf]
    %v422 = vld [vmem:[#allocation7 + $0xfc] sm:$0xf]
    %v423 = vld [vmem:[%s4] sm:$0x1]
    %v425 = vperm.slane %v423, 0
    %v491 = vunpack.c.l.b16 %v359
    %v492 = vunpack.c.l.b16 %v360
    %v493 = vunpack.c.l.b16 %v361
    %v494 = vunpack.c.l.b16 %v362
    %v495 = vunpack.c.l.b16 %v363
    %v496 = vunpack.c.l.b16 %v364
    %v497 = vunpack.c.l.b16 %v365
    %v498 = vunpack.c.l.b16 %v366
    %v499 = vunpack.c.l.b16 %v367
    %v500 = vunpack.c.l.b16 %v368
    %v501 = vunpack.c.l.b16 %v369
    %v502 = vunpack.c.l.b16 %v370
    %v503 = vunpack.c.l.b16 %v371
    %v504 = vunpack.c.l.b16 %v372
    %v505 = vunpack.c.l.b16 %v373
    %v506 = vunpack.c.l.b16 %v374
    %v507 = vunpack.c.l.b16 %v375
    %v508 = vunpack.c.l.b16 %v376
    %v509 = vunpack.c.l.b16 %v377
    %v510 = vunpack.c.l.b16 %v378
    %v511 = vunpack.c.l.b16 %v379
    %v512 = vunpack.c.l.b16 %v380
    %v513 = vunpack.c.l.b16 %v381
    %v514 = vunpack.c.l.b16 %v382
    %v515 = vunpack.c.l.b16 %v383
    %v516 = vunpack.c.l.b16 %v384
    %v517 = vunpack.c.l.b16 %v385
    %v518 = vunpack.c.l.b16 %v386
    %v519 = vunpack.c.l.b16 %v387
    %v520 = vunpack.c.l.b16 %v388
    %v521 = vunpack.c.l.b16 %v389
    %v522 = vunpack.c.l.b16 %v390
    %v523 = vunpack.c.l.b16 %v391
    %v524 = vunpack.c.l.b16 %v392
    %v525 = vunpack.c.l.b16 %v393
    %v526 = vunpack.c.l.b16 %v394
    %v527 = vunpack.c.l.b16 %v395
    %v528 = vunpack.c.l.b16 %v396
    %v529 = vunpack.c.l.b16 %v397
    %v530 = vunpack.c.l.b16 %v398
    %v531 = vunpack.c.l.b16 %v399
    %v532 = vunpack.c.l.b16 %v400
    %v533 = vunpack.c.l.b16 %v401
    %v534 = vunpack.c.l.b16 %v402
    %v535 = vunpack.c.l.b16 %v403
    %v536 = vunpack.c.l.b16 %v404
    %v537 = vunpack.c.l.b16 %v405
    %v538 = vunpack.c.l.b16 %v406
    %v539 = vunpack.c.l.b16 %v407
    %v540 = vunpack.c.l.b16 %v408
    %v541 = vunpack.c.l.b16 %v409
    %v542 = vunpack.c.l.b16 %v410
    %v543 = vunpack.c.l.b16 %v411
    %v544 = vunpack.c.l.b16 %v412
    %v545 = vunpack.c.l.b16 %v413
    %v546 = vunpack.c.l.b16 %v414
    %v547 = vunpack.c.l.b16 %v415
    %v548 = vunpack.c.l.b16 %v416
    %v549 = vunpack.c.l.b16 %v417
    %v550 = vunpack.c.l.b16 %v418
    %v551 = vunpack.c.l.b16 %v419
    %v552 = vunpack.c.l.b16 %v420
    %v553 = vunpack.c.l.b16 %v421
    %v554 = vunpack.c.l.b16 %v422
    %v555 = vpack.c.b16 %v492, %v491
    %v556 = vpack.c.b16 %v494, %v493
    %v557 = vpack.c.b16 %v496, %v495
    %v558 = vpack.c.b16 %v498, %v497
    %v559 = vpack.c.b16 %v500, %v499
    %v560 = vpack.c.b16 %v502, %v501
    %v561 = vpack.c.b16 %v504, %v503
    %v562 = vpack.c.b16 %v506, %v505
    %v563 = vpack.c.b16 %v508, %v507
    %v564 = vpack.c.b16 %v510, %v509
    %v565 = vpack.c.b16 %v512, %v511
    %v566 = vpack.c.b16 %v514, %v513
    %v567 = vpack.c.b16 %v516, %v515
    %v568 = vpack.c.b16 %v518, %v517
    %v569 = vpack.c.b16 %v520, %v519
    %v570 = vpack.c.b16 %v522, %v521
    %v571 = vpack.c.b16 %v524, %v523
    %v572 = vpack.c.b16 %v526, %v525
    %v573 = vpack.c.b16 %v528, %v527
    %v574 = vpack.c.b16 %v530, %v529
    %v575 = vpack.c.b16 %v532, %v531
    %v576 = vpack.c.b16 %v534, %v533
    %v577 = vpack.c.b16 %v536, %v535
    %v578 = vpack.c.b16 %v538, %v537
    %v579 = vpack.c.b16 %v540, %v539
    %v580 = vpack.c.b16 %v542, %v541
    %v581 = vpack.c.b16 %v544, %v543
    %v582 = vpack.c.b16 %v546, %v545
    %v583 = vpack.c.b16 %v548, %v547
    %v584 = vpack.c.b16 %v550, %v549
    %v585 = vpack.c.b16 %v552, %v551
    %v586 = vpack.c.b16 %v554, %v553
    %619 = vmatpush.bf16.msra.mxu0 %v562
    %620 = vmatpush.bf16.msra.mxu0 %v561
    %621 = vmatpush.bf16.msra.mxu0 %v560
    %622 = vmatpush.bf16.msra.mxu0 %v559
    %623 = vmatpush.bf16.msra.mxu0 %v558
    %624 = vmatpush.bf16.msra.mxu0 %v557
    %625 = vmatpush.bf16.msra.mxu0 %v556
    %626 = vmatpush.bf16.msra.mxu0 %v555
    %627 = vmatmul.bf16.gmra.mxu0 %v355
    %v628 = vpop.f32.mrf.mxu0
    %v629 = vadd.f32 %v425, %v628
    %v630 = vpop.f32.mrf.mxu0
    %v631 = vadd.f32 %v425, %v630
    %632 = vdwg.mxu0
    %633 = vmatpush.bf16.msra.mxu0 %v570
    %634 = vmatpush.bf16.msra.mxu0 %v569
    %635 = vmatpush.bf16.msra.mxu0 %v568
    %636 = vmatpush.bf16.msra.mxu0 %v567
    %637 = vmatpush.bf16.msra.mxu0 %v566
    %638 = vmatpush.bf16.msra.mxu0 %v565
    %639 = vmatpush.bf16.msra.mxu0 %v564
    %640 = vmatpush.bf16.msra.mxu0 %v563
    %641 = vmatmul.bf16.gmra.mxu0 %v356
    %v642 = vpop.f32.mrf.mxu0
    %v643 = vadd.f32 %v629, %v642
    %v644 = vpop.f32.mrf.mxu0
    %v645 = vadd.f32 %v631, %v644
    %646 = vdwg.mxu0
    %647 = vmatpush.bf16.msra.mxu0 %v578
    %648 = vmatpush.bf16.msra.mxu0 %v577
    %649 = vmatpush.bf16.msra.mxu0 %v576
    %650 = vmatpush.bf16.msra.mxu0 %v575
    %651 = vmatpush.bf16.msra.mxu0 %v574
    %652 = vmatpush.bf16.msra.mxu0 %v573
    %653 = vmatpush.bf16.msra.mxu0 %v572
    %654 = vmatpush.bf16.msra.mxu0 %v571
    %655 = vmatmul.bf16.gmra.mxu0 %v357
    %v656 = vpop.f32.mrf.mxu0
    %v657 = vadd.f32 %v643, %v656
    %v658 = vpop.f32.mrf.mxu0
    %v659 = vadd.f32 %v645, %v658
    %660 = vdwg.mxu0
    %661 = vmatpush.bf16.msra.mxu0 %v586
    %662 = vmatpush.bf16.msra.mxu0 %v585
    %663 = vmatpush.bf16.msra.mxu0 %v584
    %664 = vmatpush.bf16.msra.mxu0 %v583
    %665 = vmatpush.bf16.msra.mxu0 %v582
    %666 = vmatpush.bf16.msra.mxu0 %v581
    %667 = vmatpush.bf16.msra.mxu0 %v580
    %668 = vmatpush.bf16.msra.mxu0 %v579
    %669 = vmatmul.bf16.gmra.mxu0 %v358
    %v670 = vpop.f32.mrf.mxu0
    %v671 = vadd.f32 %v657, %v670
    %v672 = vpop.f32.mrf.mxu0
    %v673 = vadd.f32 %v659, %v672
    %674 = vdwg.mxu0
    %v675 = vpack.c.bf16 %v671, %v671
    %v676 = vpack.c.bf16 %v673, %v673
    %677 = vst [vmem:[%s5] sm:$0xf] %v675
    %678 = vst [vmem:[%s5 + $0x4] sm:$0xf] %v676
    // Predicated region
    $region38: #{feed_forward.1} parent=1 // pred_check
      _
    $region39: #{feed_forward.1} parent=1 // pred_check_branch
      %680 = sbr.rel (0) target = $region41
    $region40: #{feed_forward.1} parent=1 // pred_region
      _
    $region41: #{feed_forward.1} parent=1 // pred_fallthru
      _
    // Predicated region
    $region42: #{feed_forward.1} parent=1 // pred_check
      _
    $region43: #{feed_forward.1} parent=1 // pred_check_branch
      %682 = sbr.rel (0) target = $region45
    $region44: #{feed_forward.1} parent=1 // pred_region
      _
    $region45: #{feed_forward.1} parent=1 // pred_fallthru
      _
    %683 = vsyncpa [#allocation3], 1
    %684 = vsyncpa [#allocation5], 1
    %685 = vsyncpa [#allocation8], 1

</llo_original>
